<compile_context>
chip_gen: v6e
topology: v6e:2x2x1
jax: 0.10.0
libtpu: 0.0.40
codegen_flags: <defaults>
</compile_context>

<pallas_src>
import functools

import numpy as np
import jax
import jax.numpy as jnp
from jax.experimental import pallas as pl
from jax.experimental.pallas import tpu as pltpu

LN_EPS = 1e-5  # nn.LayerNorm default


def _round_up(x, m):
    return ((x + m - 1) // m) * m


def _layernorm(h, gamma, beta):
    # Two-pass statistics (matches nn.LayerNorm / the reference exactly; avoids
    # the E[h^2]-E[h]^2 cancellation risk on non-negative post-ReLU inputs).
    mu = jnp.mean(h, axis=-1, keepdims=True)
    c = h - mu
    var = jnp.mean(c * c, axis=-1, keepdims=True)
    return c * jax.lax.rsqrt(var + LN_EPS) * gamma + beta


def policy_kernel(x_ref,
                  w1_ref, b1_ref, g1_ref, bt1_ref,
                  w2_ref, b2_ref, g2_ref, bt2_ref,
                  w3_ref, b3_ref,
                  out_ref,
                  *, use_bf16_matmul=False):
    mm_dtype = jnp.bfloat16 if use_bf16_matmul else jnp.float32

    def dense(h, w_ref, b_ref):
        # bias add + everything downstream stays f32; only MXU operands narrow.
        return jnp.dot(h.astype(mm_dtype), w_ref[...].astype(mm_dtype),
                       preferred_element_type=jnp.float32) + b_ref[...]

    x = x_ref[...]

    # fc1 -> relu -> ln1   (dropout1: identity in eval mode)
    h = jnp.maximum(dense(x, w1_ref, b1_ref), 0.0)
    h = _layernorm(h, g1_ref[...], bt1_ref[...])

    # fc2 -> relu -> ln2   (dropout2: identity in eval mode)
    h = jnp.maximum(dense(h, w2_ref, b2_ref), 0.0)
    h = _layernorm(h, g2_ref[...], bt2_ref[...])

    # fc3 -> logits (lane-dense: padded to 128 output columns, unmasked stores)
    out_ref[...] = dense(h, w3_ref, b3_ref).astype(out_ref.dtype)


def _choose_tiling(B, batch_tile):
    """Balanced batch tiles, multiple of 8 sublanes, >=2 tiles when the batch is
    big enough to matter so both v7x TensorCores get work."""
    n_tiles = pl.cdiv(B, batch_tile)
    if B > 2 * 8 and n_tiles < 2:
        n_tiles = 2
    tb = _round_up(pl.cdiv(B, n_tiles), 8)
    n_tiles = pl.cdiv(B, tb)        # rounding may have reduced the tile count
    return tb, n_tiles, tb * n_tiles


def policy_forward(state, params, *, batch_tile=1024, use_bf16_matmul=False,
                   out_dtype=jnp.float32, return_padded=False):
    """state: (B, state_size) f32.  params: dict from init_params.

    Returns (B, action_size) logits (or the padded (Bp, AP) block if
    return_padded=True; padded columns/rows are exactly zero)."""
    B, S = state.shape
    H = params["w1"].shape[1]
    A = params["action_size"]           # true (unpadded) number of actions
    AP = params["w3p"].shape[1]         # lane-dense padded output width (>=128)

    TB, n_tiles, Bp = _choose_tiling(B, batch_tile)
    if Bp != B:
        state = jnp.pad(state, ((0, Bp - B), (0, 0)))

    def row_map(i):            # activations / output: walk the batch axis
        return (i, 0)

    def const_map(i):          # weights / LN params: VMEM-resident, block (0,0)
        return (0, 0)

    w_args = (params["w1"], params["b1"], params["g1"], params["bt1"],
              params["w2"], params["b2"], params["g2"], params["bt2"],
              params["w3p"], params["b3p"])

    in_specs = [pl.BlockSpec((TB, S), row_map)]
    in_specs += [pl.BlockSpec(w.shape, const_map) for w in w_args]
    out_spec = pl.BlockSpec((TB, AP), row_map)

    flops = 2 * Bp * (S * H + H * H + H * AP)
    bytes_accessed = 4 * (Bp * S
                          + sum(int(np.prod(w.shape)) for w in w_args)) \
                     + Bp * AP * jnp.dtype(out_dtype).itemsize
    transcendentals = 2 * Bp  # one rsqrt per LayerNorm per row

    kernel = functools.partial(policy_kernel, use_bf16_matmul=use_bf16_matmul)

    logits = pl.pallas_call(
        kernel,
        out_shape=jax.ShapeDtypeStruct((Bp, AP), out_dtype),
        grid=(n_tiles,),
        in_specs=in_specs,
        out_specs=out_spec,
        compiler_params=pltpu.CompilerParams(
            dimension_semantics=("parallel",)),
        cost_estimate=pl.CostEstimate(
            flops=flops,
            transcendentals=transcendentals,
            bytes_accessed=bytes_accessed),
    )(state, *w_args)

    if return_padded:
        return logits               # padded cols/rows are exactly zero
    return logits[:B, :A]


def init_params(key, state_size, action_size, hidden_size=128):
    """Mirror PolicyNetwork._initialize_weights: orthogonal(gain=sqrt(2)) weights,
    zero biases; LayerNorm weight=1, bias=0.  Weights are stored (in, out) so the
    kernel computes y = x @ W + b.  fc3 is additionally zero-padded to a
    lane-dense 128-wide output (w3p / b3p); the true w3/b3 are kept for the
    reference path."""
    k1, k2, k3 = jax.random.split(key, 3)
    ortho = jax.nn.initializers.orthogonal(scale=float(np.sqrt(2.0)))
    w1 = ortho(k1, (state_size, hidden_size), jnp.float32)
    w2 = ortho(k2, (hidden_size, hidden_size), jnp.float32)
    w3 = ortho(k3, (hidden_size, action_size), jnp.float32)

    AP = max(128, _round_up(action_size, 128))
    w3p = jnp.zeros((hidden_size, AP), jnp.float32).at[:, :action_size].set(w3)
    b3 = jnp.zeros((1, action_size), jnp.float32)
    b3p = jnp.zeros((1, AP), jnp.float32)  # padded columns stay exactly zero

    return {
        "w1": w1, "b1": jnp.zeros((1, hidden_size), jnp.float32),
        "g1": jnp.ones((1, hidden_size), jnp.float32),
        "bt1": jnp.zeros((1, hidden_size), jnp.float32),
        "w2": w2, "b2": jnp.zeros((1, hidden_size), jnp.float32),
        "g2": jnp.ones((1, hidden_size), jnp.float32),
        "bt2": jnp.zeros((1, hidden_size), jnp.float32),
        "w3": w3, "b3": b3,
        "w3p": w3p, "b3p": b3p,
        "action_size": action_size,
    }


def reference_forward(state, params):
    """Pure-JAX reference of the same forward (eval mode), unpadded weights."""
    def ln(h, g, b):
        mu = jnp.mean(h, axis=-1, keepdims=True)
        var = jnp.mean((h - mu) ** 2, axis=-1, keepdims=True)
        return (h - mu) * jax.lax.rsqrt(var + LN_EPS) * g + b

    h = jnp.maximum(state @ params["w1"] + params["b1"], 0.0)
    h = ln(h, params["g1"], params["bt1"])
    h = jnp.maximum(h @ params["w2"] + params["b2"], 0.0)
    h = ln(h, params["g2"], params["bt2"])
    return h @ params["w3"] + params["b3"]


if __name__ == "__main__":
    key = jax.random.PRNGKey(0)
    k_params, k_s1, k_s2 = jax.random.split(key, 3)

    state_size = 16
    action_size = 4
    hidden_size = 128  # module default

    params = init_params(k_params, state_size, action_size, hidden_size)

    # Case 1: small batch (single tile), exact f32 path.
    s1 = jax.random.normal(k_s1, (8, state_size), dtype=jnp.float32)
    out1 = jax.block_until_ready(policy_forward(s1, params))
    ref1 = jax.block_until_ready(reference_forward(s1, params))
    np.testing.assert_allclose(np.asarray(out1), np.asarray(ref1),
                               rtol=1e-5, atol=1e-5)
    assert out1.shape == (8, action_size)

    # Case 2: batch exercising balanced tiling, row padding and >=2 grid steps.
    s2 = jax.random.normal(k_s2, (40, state_size), dtype=jnp.float32)
    out2 = jax.block_until_ready(policy_forward(s2, params))
    ref2 = jax.block_until_ready(reference_forward(s2, params))
    np.testing.assert_allclose(np.asarray(out2), np.asarray(ref2),
                               rtol=1e-5, atol=1e-5)
    assert out2.shape == (40, action_size)

    # Case 3: bf16 MXU operands (lossy fast path for v6e/v7x), loose tolerance.
    out3 = jax.block_until_ready(
        policy_forward(s2, params, use_bf16_matmul=True))
    np.testing.assert_allclose(np.asarray(out3), np.asarray(ref2),
                               rtol=5e-2, atol=5e-2)

    print("KERNEL_OK")
</pallas_src>

<mosaic_0001>
module attributes {stable_mosaic.version = 11 : i64} {
  func.func @policy_kernel(%arg0: i32, %arg1: memref<8x16xf32, #tpu.memory_space<vmem>>, %arg2: memref<16x128xf32, #tpu.memory_space<vmem>>, %arg3: memref<1x128xf32, #tpu.memory_space<vmem>>, %arg4: memref<1x128xf32, #tpu.memory_space<vmem>>, %arg5: memref<1x128xf32, #tpu.memory_space<vmem>>, %arg6: memref<128x128xf32, #tpu.memory_space<vmem>>, %arg7: memref<1x128xf32, #tpu.memory_space<vmem>>, %arg8: memref<1x128xf32, #tpu.memory_space<vmem>>, %arg9: memref<1x128xf32, #tpu.memory_space<vmem>>, %arg10: memref<128x128xf32, #tpu.memory_space<vmem>>, %arg11: memref<1x128xf32, #tpu.memory_space<vmem>>, %arg12: memref<8x128xf32, #tpu.memory_space<vmem>>) attributes {dimension_semantics = [#tpu.dimension_semantics<parallel>], iteration_bounds = array<i64: 1>, scalar_prefetch = 0 : i64, scratch_operands = 0 : i64, tpu.core_type = #tpu.core_type<tc>, window_params = [{transform_indices = @transform_0, window_bounds = array<i64: 8, 16>}, {pipeline_mode = #tpu.pipeline_mode<synchronous>, transform_indices = @transform_1, window_bounds = array<i64: 16, 128>}, {pipeline_mode = #tpu.pipeline_mode<synchronous>, transform_indices = @transform_2, window_bounds = array<i64: 1, 128>}, {pipeline_mode = #tpu.pipeline_mode<synchronous>, transform_indices = @transform_3, window_bounds = array<i64: 1, 128>}, {pipeline_mode = #tpu.pipeline_mode<synchronous>, transform_indices = @transform_4, window_bounds = array<i64: 1, 128>}, {pipeline_mode = #tpu.pipeline_mode<synchronous>, transform_indices = @transform_5, window_bounds = array<i64: 128, 128>}, {pipeline_mode = #tpu.pipeline_mode<synchronous>, transform_indices = @transform_6, window_bounds = array<i64: 1, 128>}, {pipeline_mode = #tpu.pipeline_mode<synchronous>, transform_indices = @transform_7, window_bounds = array<i64: 1, 128>}, {pipeline_mode = #tpu.pipeline_mode<synchronous>, transform_indices = @transform_8, window_bounds = array<i64: 1, 128>}, {pipeline_mode = #tpu.pipeline_mode<synchronous>, transform_indices = @transform_9, window_bounds = array<i64: 128, 128>}, {pipeline_mode = #tpu.pipeline_mode<synchronous>, transform_indices = @transform_10, window_bounds = array<i64: 1, 128>}, {transform_indices = @transform_11, window_bounds = array<i64: 8, 128>}]} {
    %c0 = arith.constant 0 : index
    %c0_0 = arith.constant 0 : index
    %0 = vector.load %arg1[%c0, %c0_0] : memref<8x16xf32, #tpu.memory_space<vmem>>, vector<8x16xf32>
    %c0_1 = arith.constant 0 : index
    %c0_2 = arith.constant 0 : index
    %1 = vector.load %arg2[%c0_1, %c0_2] : memref<16x128xf32, #tpu.memory_space<vmem>>, vector<16x128xf32>
    %cst = arith.constant dense<0.000000e+00> : vector<8x128xf32>
    %2 = tpu.matmul %0, %1, %cst {dimension_numbers = #tpu.dot_dimension_numbers<[1], [0], [0], [1], [0, 0, 1, 1], [], []>} : vector<8x16xf32>, vector<16x128xf32>, vector<8x128xf32> -> vector<8x128xf32>
    %c0_3 = arith.constant 0 : index
    %c0_4 = arith.constant 0 : index
    %3 = vector.load %arg3[%c0_3, %c0_4] : memref<1x128xf32, #tpu.memory_space<vmem>>, vector<1x128xf32>
    %4 = vector.broadcast %3 : vector<1x128xf32> to vector<8x128xf32>
    %5 = arith.addf %2, %4 : vector<8x128xf32>
    %cst_5 = arith.constant 0.000000e+00 : f32
    %6 = vector.broadcast %cst_5 : f32 to vector<8x128xf32>
    %7 = arith.maximumf %5, %6 : vector<8x128xf32>
    %c0_6 = arith.constant 0 : index
    %c0_7 = arith.constant 0 : index
    %8 = vector.load %arg4[%c0_6, %c0_7] : memref<1x128xf32, #tpu.memory_space<vmem>>, vector<1x128xf32>
    %c0_8 = arith.constant 0 : index
    %c0_9 = arith.constant 0 : index
    %9 = vector.load %arg5[%c0_8, %c0_9] : memref<1x128xf32, #tpu.memory_space<vmem>>, vector<1x128xf32>
    %cst_10 = arith.constant dense<0.000000e+00> : vector<8xf32>
    %10 = vector.multi_reduction <add>, %7, %cst_10 [1] : vector<8x128xf32> to vector<8xf32>
    %11 = vector.shape_cast %10 : vector<8xf32> to vector<8x1xf32>
    %cst_11 = arith.constant 1.280000e+02 : f32
    %12 = vector.broadcast %cst_11 : f32 to vector<8x1xf32>
    %13 = arith.divf %11, %12 : vector<8x1xf32>
    %14 = vector.broadcast %13 : vector<8x1xf32> to vector<8x128xf32>
    %15 = arith.subf %7, %14 : vector<8x128xf32>
    %16 = arith.mulf %15, %15 : vector<8x128xf32>
    %cst_12 = arith.constant dense<0.000000e+00> : vector<8xf32>
    %17 = vector.multi_reduction <add>, %16, %cst_12 [1] : vector<8x128xf32> to vector<8xf32>
    %18 = vector.shape_cast %17 : vector<8xf32> to vector<8x1xf32>
    %cst_13 = arith.constant 1.280000e+02 : f32
    %19 = vector.broadcast %cst_13 : f32 to vector<8x1xf32>
    %20 = arith.divf %18, %19 : vector<8x1xf32>
    %cst_14 = arith.constant 9.99999974E-6 : f32
    %21 = vector.broadcast %cst_14 : f32 to vector<8x1xf32>
    %22 = arith.addf %20, %21 : vector<8x1xf32>
    %23 = math.rsqrt %22 : vector<8x1xf32>
    %24 = vector.broadcast %23 : vector<8x1xf32> to vector<8x128xf32>
    %25 = arith.mulf %15, %24 : vector<8x128xf32>
    %26 = vector.broadcast %8 : vector<1x128xf32> to vector<8x128xf32>
    %27 = arith.mulf %25, %26 : vector<8x128xf32>
    %28 = vector.broadcast %9 : vector<1x128xf32> to vector<8x128xf32>
    %29 = arith.addf %27, %28 : vector<8x128xf32>
    %c0_15 = arith.constant 0 : index
    %c0_16 = arith.constant 0 : index
    %30 = vector.load %arg6[%c0_15, %c0_16] : memref<128x128xf32, #tpu.memory_space<vmem>>, vector<128x128xf32>
    %cst_17 = arith.constant dense<0.000000e+00> : vector<8x128xf32>
    %31 = tpu.matmul %29, %30, %cst_17 {dimension_numbers = #tpu.dot_dimension_numbers<[1], [0], [0], [1], [0, 0, 1, 1], [], []>} : vector<8x128xf32>, vector<128x128xf32>, vector<8x128xf32> -> vector<8x128xf32>
    %c0_18 = arith.constant 0 : index
    %c0_19 = arith.constant 0 : index
    %32 = vector.load %arg7[%c0_18, %c0_19] : memref<1x128xf32, #tpu.memory_space<vmem>>, vector<1x128xf32>
    %33 = vector.broadcast %32 : vector<1x128xf32> to vector<8x128xf32>
    %34 = arith.addf %31, %33 : vector<8x128xf32>
    %cst_20 = arith.constant 0.000000e+00 : f32
    %35 = vector.broadcast %cst_20 : f32 to vector<8x128xf32>
    %36 = arith.maximumf %34, %35 : vector<8x128xf32>
    %c0_21 = arith.constant 0 : index
    %c0_22 = arith.constant 0 : index
    %37 = vector.load %arg8[%c0_21, %c0_22] : memref<1x128xf32, #tpu.memory_space<vmem>>, vector<1x128xf32>
    %c0_23 = arith.constant 0 : index
    %c0_24 = arith.constant 0 : index
    %38 = vector.load %arg9[%c0_23, %c0_24] : memref<1x128xf32, #tpu.memory_space<vmem>>, vector<1x128xf32>
    %cst_25 = arith.constant dense<0.000000e+00> : vector<8xf32>
    %39 = vector.multi_reduction <add>, %36, %cst_25 [1] : vector<8x128xf32> to vector<8xf32>
    %40 = vector.shape_cast %39 : vector<8xf32> to vector<8x1xf32>
    %cst_26 = arith.constant 1.280000e+02 : f32
    %41 = vector.broadcast %cst_26 : f32 to vector<8x1xf32>
    %42 = arith.divf %40, %41 : vector<8x1xf32>
    %43 = vector.broadcast %42 : vector<8x1xf32> to vector<8x128xf32>
    %44 = arith.subf %36, %43 : vector<8x128xf32>
    %45 = arith.mulf %44, %44 : vector<8x128xf32>
    %cst_27 = arith.constant dense<0.000000e+00> : vector<8xf32>
    %46 = vector.multi_reduction <add>, %45, %cst_27 [1] : vector<8x128xf32> to vector<8xf32>
    %47 = vector.shape_cast %46 : vector<8xf32> to vector<8x1xf32>
    %cst_28 = arith.constant 1.280000e+02 : f32
    %48 = vector.broadcast %cst_28 : f32 to vector<8x1xf32>
    %49 = arith.divf %47, %48 : vector<8x1xf32>
    %cst_29 = arith.constant 9.99999974E-6 : f32
    %50 = vector.broadcast %cst_29 : f32 to vector<8x1xf32>
    %51 = arith.addf %49, %50 : vector<8x1xf32>
    %52 = math.rsqrt %51 : vector<8x1xf32>
    %53 = vector.broadcast %52 : vector<8x1xf32> to vector<8x128xf32>
    %54 = arith.mulf %44, %53 : vector<8x128xf32>
    %55 = vector.broadcast %37 : vector<1x128xf32> to vector<8x128xf32>
    %56 = arith.mulf %54, %55 : vector<8x128xf32>
    %57 = vector.broadcast %38 : vector<1x128xf32> to vector<8x128xf32>
    %58 = arith.addf %56, %57 : vector<8x128xf32>
    %c0_30 = arith.constant 0 : index
    %c0_31 = arith.constant 0 : index
    %59 = vector.load %arg10[%c0_30, %c0_31] : memref<128x128xf32, #tpu.memory_space<vmem>>, vector<128x128xf32>
    %cst_32 = arith.constant dense<0.000000e+00> : vector<8x128xf32>
    %60 = tpu.matmul %58, %59, %cst_32 {dimension_numbers = #tpu.dot_dimension_numbers<[1], [0], [0], [1], [0, 0, 1, 1], [], []>} : vector<8x128xf32>, vector<128x128xf32>, vector<8x128xf32> -> vector<8x128xf32>
    %c0_33 = arith.constant 0 : index
    %c0_34 = arith.constant 0 : index
    %61 = vector.load %arg11[%c0_33, %c0_34] : memref<1x128xf32, #tpu.memory_space<vmem>>, vector<1x128xf32>
    %62 = vector.broadcast %61 : vector<1x128xf32> to vector<8x128xf32>
    %63 = arith.addf %60, %62 : vector<8x128xf32>
    %c0_35 = arith.constant 0 : index
    %c0_36 = arith.constant 0 : index
    %64 = vector.load %arg12[%c0_35, %c0_36] : memref<8x128xf32, #tpu.memory_space<vmem>>, vector<8x128xf32>
    tpu.vector_store %arg12[%c0_35, %c0_36], %63 {strides = array<i32>} : memref<8x128xf32, #tpu.memory_space<vmem>>, vector<8x128xf32>,
    return
  }
  func.func @transform_0(%arg0: i32) -> (i32, i32) {
    %c0_i32 = arith.constant 0 : i32
    %c0_i32_0 = arith.constant 0 : i32
    return %arg0, %c0_i32 : i32, i32
  }
  func.func @transform_1(%arg0: i32) -> (i32, i32) {
    %c0_i32 = arith.constant 0 : i32
    %c0_i32_0 = arith.constant 0 : i32
    %c0_i32_1 = arith.constant 0 : i32
    return %c0_i32, %c0_i32_0 : i32, i32
  }
  func.func @transform_2(%arg0: i32) -> (i32, i32) {
    %c0_i32 = arith.constant 0 : i32
    %c0_i32_0 = arith.constant 0 : i32
    %c0_i32_1 = arith.constant 0 : i32
    return %c0_i32, %c0_i32_0 : i32, i32
  }
  func.func @transform_3(%arg0: i32) -> (i32, i32) {
    %c0_i32 = arith.constant 0 : i32
    %c0_i32_0 = arith.constant 0 : i32
    %c0_i32_1 = arith.constant 0 : i32
    return %c0_i32, %c0_i32_0 : i32, i32
  }
  func.func @transform_4(%arg0: i32) -> (i32, i32) {
    %c0_i32 = arith.constant 0 : i32
    %c0_i32_0 = arith.constant 0 : i32
    %c0_i32_1 = arith.constant 0 : i32
    return %c0_i32, %c0_i32_0 : i32, i32
  }
  func.func @transform_5(%arg0: i32) -> (i32, i32) {
    %c0_i32 = arith.constant 0 : i32
    %c0_i32_0 = arith.constant 0 : i32
    %c0_i32_1 = arith.constant 0 : i32
    return %c0_i32, %c0_i32_0 : i32, i32
  }
  func.func @transform_6(%arg0: i32) -> (i32, i32) {
    %c0_i32 = arith.constant 0 : i32
    %c0_i32_0 = arith.constant 0 : i32
    %c0_i32_1 = arith.constant 0 : i32
    return %c0_i32, %c0_i32_0 : i32, i32
  }
  func.func @transform_7(%arg0: i32) -> (i32, i32) {
    %c0_i32 = arith.constant 0 : i32
    %c0_i32_0 = arith.constant 0 : i32
    %c0_i32_1 = arith.constant 0 : i32
    return %c0_i32, %c0_i32_0 : i32, i32
  }
  func.func @transform_8(%arg0: i32) -> (i32, i32) {
    %c0_i32 = arith.constant 0 : i32
    %c0_i32_0 = arith.constant 0 : i32
    %c0_i32_1 = arith.constant 0 : i32
    return %c0_i32, %c0_i32_0 : i32, i32
  }
  func.func @transform_9(%arg0: i32) -> (i32, i32) {
    %c0_i32 = arith.constant 0 : i32
    %c0_i32_0 = arith.constant 0 : i32
    %c0_i32_1 = arith.constant 0 : i32
    return %c0_i32, %c0_i32_0 : i32, i32
  }
  func.func @transform_10(%arg0: i32) -> (i32, i32) {
    %c0_i32 = arith.constant 0 : i32
    %c0_i32_0 = arith.constant 0 : i32
    %c0_i32_1 = arith.constant 0 : i32
    return %c0_i32, %c0_i32_0 : i32, i32
  }
  func.func @transform_11(%arg0: i32) -> (i32, i32) {
    %c0_i32 = arith.constant 0 : i32
    %c0_i32_0 = arith.constant 0 : i32
    return %arg0, %c0_i32 : i32, i32
  }
}

</mosaic_0001>

<llo_original>
// kernel: tpu_custom_call.1
$region0: #{tpu_custom_call.1}
  #allocation0 [shape = 'u32[]', space=smem, size = 0x4, offset = 0x4, fixed_abs, tag = 'smem constant byte address 0x4 - core index']
  #allocation1 [shape = 'u32[144,128]{1,0:T(1,128)}', space=vmem, size = 0x12000, scoped, tag = 'internal scratch']
  %s0 = inlined_call_operand.hbm [shape: f32[8,16], index: 0, kind: input, shape index: {}]
  %s1 = inlined_call_operand.hbm [shape: f32[16,128], index: 1, kind: input, shape index: {}]
  %s2 = inlined_call_operand.vmem [shape: f32[1,128], index: 2, kind: input, shape index: {}]
  %s3 = inlined_call_operand.vmem [shape: f32[1,128], index: 3, kind: input, shape index: {}]
  %s4 = inlined_call_operand.vmem [shape: f32[1,128], index: 4, kind: input, shape index: {}]
  %s5 = inlined_call_operand.hbm [shape: f32[128,128], index: 5, kind: input, shape index: {}]
  %s6 = inlined_call_operand.vmem [shape: f32[1,128], index: 6, kind: input, shape index: {}]
  %s7 = inlined_call_operand.vmem [shape: f32[1,128], index: 7, kind: input, shape index: {}]
  %s8 = inlined_call_operand.vmem [shape: f32[1,128], index: 8, kind: input, shape index: {}]
  %s9 = inlined_call_operand.hbm [shape: f32[128,128], index: 9, kind: input, shape index: {}]
  %s10 = inlined_call_operand.vmem [shape: f32[1,128], index: 10, kind: input, shape index: {}]
  %s11 = inlined_call_operand.hbm [shape: f32[8,128], index: 11, kind: output, shape index: {}]
  %s12 = sld [smem:[#allocation0]]
  $region70: #{tpu_custom_call.1} parent=0
    _
  %s14 = ssub.s32 1, %s12
  %s15 = scalar_select 0, %s14, %s12
  $region1: #{tpu_custom_call.1} parent=0
    #allocation2 [shape = 'u8[4096]{0}', space=vmem, size = 0x1000, scoped, tag = 'input window, operand 0, single buffered']
    #allocation3 [shape = 's32[1]{0}', space=sflag, size = 0x4, scoped, tag = 'scoped memory for tpu_custom_call.1']
    #allocation4 [shape = 's32[1]{0}', space=sflag, size = 0x4, scoped, tag = 'scoped memory for tpu_custom_call.1']
    #allocation5 [shape = 'u8[8192]{0}', space=vmem, size = 0x2000, scoped, tag = 'input window, operand 1, single buffered']
    #allocation6 [shape = 's32[1]{0}', space=sflag, size = 0x4, scoped, tag = 'scoped memory for tpu_custom_call.1']
    #allocation7 [shape = 'u8[65536]{0}', space=vmem, size = 0x10000, scoped, tag = 'input window, operand 5, single buffered']
    #allocation8 [shape = 'u8[65536]{0}', space=vmem, size = 0x10000, scoped, tag = 'input window, operand 9, single buffered']
    #allocation9 [shape = 's32[1]{0}', space=sflag, size = 0x4, scoped, tag = 'scoped memory for tpu_custom_call.1']
    #allocation10 [shape = 'u8[4096]{0}', space=vmem, size = 0x1000, scoped, tag = 'output window, operand 0, single buffered']
    %16 = vsyncpa [#allocation3], 0
    %17 = vsyncpa [#allocation6], 0
    %18 = vsyncpa [#allocation9], 0
    %19 = vsyncpa [#allocation4], 0
    // Predicated region
    $region2: #{tpu_custom_call.1} parent=1 // pred_check
      _
    $region3: #{tpu_custom_call.1} parent=1 // pred_check_branch
      %21 = sbr.rel (0) target = $region5
    $region4: #{tpu_custom_call.1} parent=1 // pred_region
      %s23 = ssub.s32 128, 128
      %24 = vsyncadd [#allocation3], %s23
      %s26 = sshll.u32 [#allocation2], 4
      %s27 = int_to_ptr.vmem [resolvable:$true] %s26
      %29 = dma.hbm_to_vmem [thread:$0]  %s0, 128, %s27, [#allocation3]
    $region5: #{tpu_custom_call.1} parent=1 // pred_fallthru
      _
    // Predicated region
    $region6: #{tpu_custom_call.1} parent=1 // pred_check
      _
    $region7: #{tpu_custom_call.1} parent=1 // pred_check_branch
      %31 = sbr.rel (0) target = $region9
    $region8: #{tpu_custom_call.1} parent=1 // pred_region
      %s33 = ssub.s32 256, 256
      %34 = vsyncadd [#allocation6], %s33
      %s35 = sshll.u32 [#allocation5], 4
      %s36 = int_to_ptr.vmem [resolvable:$true] %s35
      %41 = dma.hbm_to_vmem [thread:$0]  %s1, 256, %s36, [#allocation6], 128, 128, 8
    $region9: #{tpu_custom_call.1} parent=1 // pred_fallthru
      _
    // Predicated region
    $region10: #{tpu_custom_call.1} parent=1 // pred_check
      _
    $region11: #{tpu_custom_call.1} parent=1 // pred_check_branch
      %43 = sbr.rel (0) target = $region13
    $region12: #{tpu_custom_call.1} parent=1 // pred_region
      _
    $region13: #{tpu_custom_call.1} parent=1 // pred_fallthru
      _
    // Predicated region
    $region14: #{tpu_custom_call.1} parent=1 // pred_check
      _
    $region15: #{tpu_custom_call.1} parent=1 // pred_check_branch
      %45 = sbr.rel (0) target = $region17
    $region16: #{tpu_custom_call.1} parent=1 // pred_region
      _
    $region17: #{tpu_custom_call.1} parent=1 // pred_fallthru
      _
    // Predicated region
    $region18: #{tpu_custom_call.1} parent=1 // pred_check
      _
    $region19: #{tpu_custom_call.1} parent=1 // pred_check_branch
      %47 = sbr.rel (0) target = $region21
    $region20: #{tpu_custom_call.1} parent=1 // pred_region
      _
    $region21: #{tpu_custom_call.1} parent=1 // pred_fallthru
      _
    // Predicated region
    $region22: #{tpu_custom_call.1} parent=1 // pred_check
      _
    $region23: #{tpu_custom_call.1} parent=1 // pred_check_branch
      %49 = sbr.rel (0) target = $region25
    $region24: #{tpu_custom_call.1} parent=1 // pred_region
      %s51 = ssub.s32 2048, 2048
      %52 = vsyncadd [#allocation6], %s51
      %s53 = sshll.u32 [#allocation7], 4
      %s54 = int_to_ptr.vmem [resolvable:$true] %s53
      %59 = dma.hbm_to_vmem [thread:$0]  %s5, 2048, %s54, [#allocation6], 128, 128, 8
    $region25: #{tpu_custom_call.1} parent=1 // pred_fallthru
      _
    // Predicated region
    $region26: #{tpu_custom_call.1} parent=1 // pred_check
      _
    $region27: #{tpu_custom_call.1} parent=1 // pred_check_branch
      %61 = sbr.rel (0) target = $region29
    $region28: #{tpu_custom_call.1} parent=1 // pred_region
      _
    $region29: #{tpu_custom_call.1} parent=1 // pred_fallthru
      _
    // Predicated region
    $region30: #{tpu_custom_call.1} parent=1 // pred_check
      _
    $region31: #{tpu_custom_call.1} parent=1 // pred_check_branch
      %63 = sbr.rel (0) target = $region33
    $region32: #{tpu_custom_call.1} parent=1 // pred_region
      _
    $region33: #{tpu_custom_call.1} parent=1 // pred_fallthru
      _
    // Predicated region
    $region34: #{tpu_custom_call.1} parent=1 // pred_check
      _
    $region35: #{tpu_custom_call.1} parent=1 // pred_check_branch
      %65 = sbr.rel (0) target = $region37
    $region36: #{tpu_custom_call.1} parent=1 // pred_region
      _
    $region37: #{tpu_custom_call.1} parent=1 // pred_fallthru
      _
    // Predicated region
    $region38: #{tpu_custom_call.1} parent=1 // pred_check
      _
    $region39: #{tpu_custom_call.1} parent=1 // pred_check_branch
      %67 = sbr.rel (0) target = $region41
    $region40: #{tpu_custom_call.1} parent=1 // pred_region
      %s69 = ssub.s32 2048, 2048
      %70 = vsyncadd [#allocation9], %s69
      %s71 = sshll.u32 [#allocation8], 4
      %s72 = int_to_ptr.vmem [resolvable:$true] %s71
      %77 = dma.hbm_to_vmem [thread:$0]  %s9, 2048, %s72, [#allocation9], 128, 128, 8
    $region41: #{tpu_custom_call.1} parent=1 // pred_fallthru
      _
    // Predicated region
    $region42: #{tpu_custom_call.1} parent=1 // pred_check
      _
    $region43: #{tpu_custom_call.1} parent=1 // pred_check_branch
      %79 = sbr.rel (0) target = $region45
    $region44: #{tpu_custom_call.1} parent=1 // pred_region
      _
    $region45: #{tpu_custom_call.1} parent=1 // pred_fallthru
      _
    // Predicated region
    $region46: #{tpu_custom_call.1} parent=1 // pred_check
      _
    $region47: #{tpu_custom_call.1} parent=1 // pred_check_branch
      %81 = sbr.rel (0) target = $region49
    $region48: #{tpu_custom_call.1} parent=1 // pred_region
      %82 = dma.done [#allocation3], 128
    $region49: #{tpu_custom_call.1} parent=1 // pred_fallthru
      _
    // Predicated region
    $region50: #{tpu_custom_call.1} parent=1 // pred_check
      _
    $region51: #{tpu_custom_call.1} parent=1 // pred_check_branch
      %84 = sbr.rel (0) target = $region53
    $region52: #{tpu_custom_call.1} parent=1 // pred_region
      %85 = dma.done [#allocation6], 256
    $region53: #{tpu_custom_call.1} parent=1 // pred_fallthru
      _
    // Predicated region
    $region54: #{tpu_custom_call.1} parent=1 // pred_check
      _
    $region55: #{tpu_custom_call.1} parent=1 // pred_check_branch
      %87 = sbr.rel (0) target = $region57
    $region56: #{tpu_custom_call.1} parent=1 // pred_region
      %88 = dma.done [#allocation6], 2048
    $region57: #{tpu_custom_call.1} parent=1 // pred_fallthru
      _
    // Predicated region
    $region58: #{tpu_custom_call.1} parent=1 // pred_check
      _
    $region59: #{tpu_custom_call.1} parent=1 // pred_check_branch
      %90 = sbr.rel (0) target = $region61
    $region60: #{tpu_custom_call.1} parent=1 // pred_region
      %91 = dma.done [#allocation9], 2048
    $region61: #{tpu_custom_call.1} parent=1 // pred_fallthru
      _
    %v92 = vld [vmem:[#allocation2] sm:$0xff]
    %v93 = vld [vmem:[#allocation5] sm:$0xff]
    %v94 = vld [vmem:[#allocation5 + $0x8] sm:$0xff]
    %v95 = vld [vmem:[%s2] sm:$0x1]
    %v97 = vlaneseq
    %v98 = vshrl.u32 %v97, 7
    %v99 = vsub.s32 0, %v98
    %v100 = vrot.slane %v95, %v99
    %vm102 = vcmask 130048
    %v104 = vsel %vm102, %v92, 0
    %106 = vmatprep.subr.mxu0 0.0
    %107 = vmatpush1.msra.mxu0 0.0
    %108 = vmatprep.subr.mxu0 0.0
    %109 = vmatpush1.msra.mxu0 0.0
    %110 = vmatprep.subr.mxu0 0.0
    %111 = vmatpush1.msra.mxu0 0.0
    %112 = vmatprep.subr.mxu0 0.0
    %113 = vmatpush1.msra.mxu0 0.0
    %114 = vmatprep.subr.mxu0 0.0
    %115 = vmatpush1.msra.mxu0 0.0
    %116 = vmatprep.subr.mxu0 0.0
    %117 = vmatpush1.msra.mxu0 0.0
    %118 = vmatprep.subr.mxu0 0.0
    %119 = vmatpush1.msra.mxu0 0.0
    %120 = vmatprep.subr.mxu0 0.0
    %121 = vmatpush1.msra.mxu0 0.0
    %122 = vmatprep.subr.mxu0 0.0
    %123 = vmatpush1.msra.mxu0 0.0
    %124 = vmatprep.subr.mxu0 0.0
    %125 = vmatpush1.msra.mxu0 0.0
    %126 = vmatprep.subr.mxu0 0.0
    %127 = vmatpush1.msra.mxu0 0.0
    %128 = vmatprep.subr.mxu0 0.0
    %129 = vmatpush1.msra.mxu0 0.0
    %130 = vmatprep.subr.mxu0 0.0
    %131 = vmatpush1.msra.mxu0 0.0
    %132 = vmatprep.subr.mxu0 0.0
    %133 = vmatpush1.msra.mxu0 0.0
    %134 = vmatprep.subr.mxu0 0.0
    %135 = vmatpush1.msra.mxu0 %v94
    %136 = vmatprep.subr.mxu0 0.0
    %137 = vmatpush1.msra.mxu0 %v93
    %138 = vmatprep.subr.mxu0 0.0
    %139 = vmatpush2.msra.mxu0 0.0
    %140 = vmatprep.subr.mxu0 0.0
    %141 = vmatpush2.msra.mxu0 0.0
    %142 = vmatprep.subr.mxu0 0.0
    %143 = vmatpush2.msra.mxu0 0.0
    %144 = vmatprep.subr.mxu0 0.0
    %145 = vmatpush2.msra.mxu0 0.0
    %146 = vmatprep.subr.mxu0 0.0
    %147 = vmatpush2.msra.mxu0 0.0
    %148 = vmatprep.subr.mxu0 0.0
    %149 = vmatpush2.msra.mxu0 0.0
    %150 = vmatprep.subr.mxu0 0.0
    %151 = vmatpush2.msra.mxu0 0.0
    %152 = vmatprep.subr.mxu0 0.0
    %153 = vmatpush2.msra.mxu0 0.0
    %154 = vmatprep.subr.mxu0 0.0
    %155 = vmatpush2.msra.mxu0 0.0
    %156 = vmatprep.subr.mxu0 0.0
    %157 = vmatpush2.msra.mxu0 0.0
    %158 = vmatprep.subr.mxu0 0.0
    %159 = vmatpush2.msra.mxu0 0.0
    %160 = vmatprep.subr.mxu0 0.0
    %161 = vmatpush2.msra.mxu0 0.0
    %162 = vmatprep.subr.mxu0 0.0
    %163 = vmatpush2.msra.mxu0 0.0
    %164 = vmatprep.subr.mxu0 0.0
    %165 = vmatpush2.msra.mxu0 0.0
    %166 = vmatprep.subr.mxu0 0.0
    %167 = vmatpush2.msra.mxu0 0.0
    %168 = vmatprep.subr.mxu0 0.0
    %169 = vmatpush2.msra.mxu0 0.0
    %170 = vmatprep.mubr.f32.mxu0 0.0
    %171 = vmatmul.mubr.f32.gmra.mxu0 %v104
    %v172 = vpop.f32.mrf.mxu0
    %v173 = vadd.f32 %v100, %v172
    %v174 = vpop.f32.mrf.mxu0
    %175 = vdwg.mxu0
    %v176 = vmax.f32 %v173, 0.0
    %v177 = vld [vmem:[%s3] sm:$0x1]
    %v178 = vld [vmem:[%s4] sm:$0x1]
    %179 = vadd.xlane.f32.xlu0 %v176
    %v180 = vpop.xlane.xlu0 %179
    %v181 = vrcp.pop 128.0
    %v182 = vmul.f32 %v180, %v181
    %v183 = vsub.f32 %v176, %v182
    %v184 = vmul.f32 %v183, %v183
    %185 = vadd.xlane.f32.xlu0 %v184
    %v186 = vpop.xlane.xlu0 %185
    %v187 = vmul.f32 %v186, %v181
    %v188 = vadd.f32 %v187, 1e-05
    %v189 = vrsqrt.pop %v188
    %v190 = vmul.f32 %v183, %v189
    %v192 = vlaneseq
    %v193 = vshrl.u32 %v192, 7
    %v194 = vsub.s32 0, %v193
    %v195 = vrot.slane %v177, %v194
    %v197 = vmul.f32 %v190, %v195
    %v199 = vlaneseq
    %v200 = vshrl.u32 %v199, 7
    %v201 = vsub.s32 0, %v200
    %v202 = vrot.slane %v178, %v201
    %v204 = vadd.f32 %v197, %v202
    %v205 = vld [vmem:[#allocation7] sm:$0xff]
    %v206 = vld [vmem:[#allocation7 + $0x8] sm:$0xff]
    %v207 = vld [vmem:[#allocation7 + $0x10] sm:$0xff]
    %v208 = vld [vmem:[#allocation7 + $0x18] sm:$0xff]
    %v209 = vld [vmem:[#allocation7 + $0x20] sm:$0xff]
    %v210 = vld [vmem:[#allocation7 + $0x28] sm:$0xff]
    %v211 = vld [vmem:[#allocation7 + $0x30] sm:$0xff]
    %v212 = vld [vmem:[#allocation7 + $0x38] sm:$0xff]
    %v213 = vld [vmem:[#allocation7 + $0x40] sm:$0xff]
    %v214 = vld [vmem:[#allocation7 + $0x48] sm:$0xff]
    %v215 = vld [vmem:[#allocation7 + $0x50] sm:$0xff]
    %v216 = vld [vmem:[#allocation7 + $0x58] sm:$0xff]
    %v217 = vld [vmem:[#allocation7 + $0x60] sm:$0xff]
    %v218 = vld [vmem:[#allocation7 + $0x68] sm:$0xff]
    %v219 = vld [vmem:[#allocation7 + $0x70] sm:$0xff]
    %v220 = vld [vmem:[#allocation7 + $0x78] sm:$0xff]
    %v221 = vld [vmem:[%s6] sm:$0x1]
    %v223 = vlaneseq
    %v224 = vshrl.u32 %v223, 7
    %v225 = vsub.s32 0, %v224
    %v226 = vrot.slane %v221, %v225
    %228 = vmatprep.subr.mxu0 0.0
    %229 = vmatpush1.msra.mxu0 %v220
    %230 = vmatprep.subr.mxu0 0.0
    %231 = vmatpush1.msra.mxu0 %v219
    %232 = vmatprep.subr.mxu0 0.0
    %233 = vmatpush1.msra.mxu0 %v218
    %234 = vmatprep.subr.mxu0 0.0
    %235 = vmatpush1.msra.mxu0 %v217
    %236 = vmatprep.subr.mxu0 0.0
    %237 = vmatpush1.msra.mxu0 %v216
    %238 = vmatprep.subr.mxu0 0.0
    %239 = vmatpush1.msra.mxu0 %v215
    %240 = vmatprep.subr.mxu0 0.0
    %241 = vmatpush1.msra.mxu0 %v214
    %242 = vmatprep.subr.mxu0 0.0
    %243 = vmatpush1.msra.mxu0 %v213
    %244 = vmatprep.subr.mxu0 0.0
    %245 = vmatpush1.msra.mxu0 %v212
    %246 = vmatprep.subr.mxu0 0.0
    %247 = vmatpush1.msra.mxu0 %v211
    %248 = vmatprep.subr.mxu0 0.0
    %249 = vmatpush1.msra.mxu0 %v210
    %250 = vmatprep.subr.mxu0 0.0
    %251 = vmatpush1.msra.mxu0 %v209
    %252 = vmatprep.subr.mxu0 0.0
    %253 = vmatpush1.msra.mxu0 %v208
    %254 = vmatprep.subr.mxu0 0.0
    %255 = vmatpush1.msra.mxu0 %v207
    %256 = vmatprep.subr.mxu0 0.0
    %257 = vmatpush1.msra.mxu0 %v206
    %258 = vmatprep.subr.mxu0 0.0
    %259 = vmatpush1.msra.mxu0 %v205
    %260 = vmatprep.subr.mxu0 0.0
    %261 = vmatpush2.msra.mxu0 0.0
    %262 = vmatprep.subr.mxu0 0.0
    %263 = vmatpush2.msra.mxu0 0.0
    %264 = vmatprep.subr.mxu0 0.0
    %265 = vmatpush2.msra.mxu0 0.0
    %266 = vmatprep.subr.mxu0 0.0
    %267 = vmatpush2.msra.mxu0 0.0
    %268 = vmatprep.subr.mxu0 0.0
    %269 = vmatpush2.msra.mxu0 0.0
    %270 = vmatprep.subr.mxu0 0.0
    %271 = vmatpush2.msra.mxu0 0.0
    %272 = vmatprep.subr.mxu0 0.0
    %273 = vmatpush2.msra.mxu0 0.0
    %274 = vmatprep.subr.mxu0 0.0
    %275 = vmatpush2.msra.mxu0 0.0
    %276 = vmatprep.subr.mxu0 0.0
    %277 = vmatpush2.msra.mxu0 0.0
    %278 = vmatprep.subr.mxu0 0.0
    %279 = vmatpush2.msra.mxu0 0.0
    %280 = vmatprep.subr.mxu0 0.0
    %281 = vmatpush2.msra.mxu0 0.0
    %282 = vmatprep.subr.mxu0 0.0
    %283 = vmatpush2.msra.mxu0 0.0
    %284 = vmatprep.subr.mxu0 0.0
    %285 = vmatpush2.msra.mxu0 0.0
    %286 = vmatprep.subr.mxu0 0.0
    %287 = vmatpush2.msra.mxu0 0.0
    %288 = vmatprep.subr.mxu0 0.0
    %289 = vmatpush2.msra.mxu0 0.0
    %290 = vmatprep.subr.mxu0 0.0
    %291 = vmatpush2.msra.mxu0 0.0
    %292 = vmatprep.mubr.f32.mxu0 0.0
    %293 = vmatmul.mubr.f32.gmra.mxu0 %v204
    %v294 = vpop.f32.mrf.mxu0
    %v295 = vadd.f32 %v226, %v294
    %v296 = vpop.f32.mrf.mxu0
    %297 = vdwg.mxu0
    %v298 = vmax.f32 %v295, 0.0
    %v299 = vld [vmem:[%s7] sm:$0x1]
    %v300 = vld [vmem:[%s8] sm:$0x1]
    %301 = vadd.xlane.f32.xlu0 %v298
    %v302 = vpop.xlane.xlu0 %301
    %v303 = vmul.f32 %v302, %v181
    %v304 = vsub.f32 %v298, %v303
    %v305 = vmul.f32 %v304, %v304
    %306 = vadd.xlane.f32.xlu0 %v305
    %v307 = vpop.xlane.xlu0 %306
    %v308 = vmul.f32 %v307, %v181
    %v309 = vadd.f32 %v308, 1e-05
    %v310 = vrsqrt.pop %v309
    %v311 = vmul.f32 %v304, %v310
    %v313 = vlaneseq
    %v314 = vshrl.u32 %v313, 7
    %v315 = vsub.s32 0, %v314
    %v316 = vrot.slane %v299, %v315
    %v318 = vmul.f32 %v311, %v316
    %v320 = vlaneseq
    %v321 = vshrl.u32 %v320, 7
    %v322 = vsub.s32 0, %v321
    %v323 = vrot.slane %v300, %v322
    %v325 = vadd.f32 %v318, %v323
    %v326 = vld [vmem:[#allocation8] sm:$0xff]
    %v327 = vld [vmem:[#allocation8 + $0x8] sm:$0xff]
    %v328 = vld [vmem:[#allocation8 + $0x10] sm:$0xff]
    %v329 = vld [vmem:[#allocation8 + $0x18] sm:$0xff]
    %v330 = vld [vmem:[#allocation8 + $0x20] sm:$0xff]
    %v331 = vld [vmem:[#allocation8 + $0x28] sm:$0xff]
    %v332 = vld [vmem:[#allocation8 + $0x30] sm:$0xff]
    %v333 = vld [vmem:[#allocation8 + $0x38] sm:$0xff]
    %v334 = vld [vmem:[#allocation8 + $0x40] sm:$0xff]
    %v335 = vld [vmem:[#allocation8 + $0x48] sm:$0xff]
    %v336 = vld [vmem:[#allocation8 + $0x50] sm:$0xff]
    %v337 = vld [vmem:[#allocation8 + $0x58] sm:$0xff]
    %v338 = vld [vmem:[#allocation8 + $0x60] sm:$0xff]
    %v339 = vld [vmem:[#allocation8 + $0x68] sm:$0xff]
    %v340 = vld [vmem:[#allocation8 + $0x70] sm:$0xff]
    %v341 = vld [vmem:[#allocation8 + $0x78] sm:$0xff]
    %v342 = vld [vmem:[%s10] sm:$0x1]
    %v344 = vlaneseq
    %v345 = vshrl.u32 %v344, 7
    %v346 = vsub.s32 0, %v345
    %v347 = vrot.slane %v342, %v346
    %349 = vmatprep.subr.mxu0 0.0
    %350 = vmatpush1.msra.mxu0 %v341
    %351 = vmatprep.subr.mxu0 0.0
    %352 = vmatpush1.msra.mxu0 %v340
    %353 = vmatprep.subr.mxu0 0.0
    %354 = vmatpush1.msra.mxu0 %v339
    %355 = vmatprep.subr.mxu0 0.0
    %356 = vmatpush1.msra.mxu0 %v338
    %357 = vmatprep.subr.mxu0 0.0
    %358 = vmatpush1.msra.mxu0 %v337
    %359 = vmatprep.subr.mxu0 0.0
    %360 = vmatpush1.msra.mxu0 %v336
    %361 = vmatprep.subr.mxu0 0.0
    %362 = vmatpush1.msra.mxu0 %v335
    %363 = vmatprep.subr.mxu0 0.0
    %364 = vmatpush1.msra.mxu0 %v334
    %365 = vmatprep.subr.mxu0 0.0
    %366 = vmatpush1.msra.mxu0 %v333
    %367 = vmatprep.subr.mxu0 0.0
    %368 = vmatpush1.msra.mxu0 %v332
    %369 = vmatprep.subr.mxu0 0.0
    %370 = vmatpush1.msra.mxu0 %v331
    %371 = vmatprep.subr.mxu0 0.0
    %372 = vmatpush1.msra.mxu0 %v330
    %373 = vmatprep.subr.mxu0 0.0
    %374 = vmatpush1.msra.mxu0 %v329
    %375 = vmatprep.subr.mxu0 0.0
    %376 = vmatpush1.msra.mxu0 %v328
    %377 = vmatprep.subr.mxu0 0.0
    %378 = vmatpush1.msra.mxu0 %v327
    %379 = vmatprep.subr.mxu0 0.0
    %380 = vmatpush1.msra.mxu0 %v326
    %381 = vmatprep.subr.mxu0 0.0
    %382 = vmatpush2.msra.mxu0 0.0
    %383 = vmatprep.subr.mxu0 0.0
    %384 = vmatpush2.msra.mxu0 0.0
    %385 = vmatprep.subr.mxu0 0.0
    %386 = vmatpush2.msra.mxu0 0.0
    %387 = vmatprep.subr.mxu0 0.0
    %388 = vmatpush2.msra.mxu0 0.0
    %389 = vmatprep.subr.mxu0 0.0
    %390 = vmatpush2.msra.mxu0 0.0
    %391 = vmatprep.subr.mxu0 0.0
    %392 = vmatpush2.msra.mxu0 0.0
    %393 = vmatprep.subr.mxu0 0.0
    %394 = vmatpush2.msra.mxu0 0.0
    %395 = vmatprep.subr.mxu0 0.0
    %396 = vmatpush2.msra.mxu0 0.0
    %397 = vmatprep.subr.mxu0 0.0
    %398 = vmatpush2.msra.mxu0 0.0
    %399 = vmatprep.subr.mxu0 0.0
    %400 = vmatpush2.msra.mxu0 0.0
    %401 = vmatprep.subr.mxu0 0.0
    %402 = vmatpush2.msra.mxu0 0.0
    %403 = vmatprep.subr.mxu0 0.0
    %404 = vmatpush2.msra.mxu0 0.0
    %405 = vmatprep.subr.mxu0 0.0
    %406 = vmatpush2.msra.mxu0 0.0
    %407 = vmatprep.subr.mxu0 0.0
    %408 = vmatpush2.msra.mxu0 0.0
    %409 = vmatprep.subr.mxu0 0.0
    %410 = vmatpush2.msra.mxu0 0.0
    %411 = vmatprep.subr.mxu0 0.0
    %412 = vmatpush2.msra.mxu0 0.0
    %413 = vmatprep.mubr.f32.mxu0 0.0
    %414 = vmatmul.mubr.f32.gmra.mxu0 %v325
    %v415 = vpop.f32.mrf.mxu0
    %v416 = vadd.f32 %v347, %v415
    %v417 = vpop.f32.mrf.mxu0
    %418 = vdwg.mxu0
    %419 = vst [vmem:[#allocation10] sm:$0xff] %v416
    // Predicated region
    $region62: #{tpu_custom_call.1} parent=1 // pred_check
      _
    $region63: #{tpu_custom_call.1} parent=1 // pred_check_branch
      %421 = sbr.rel (0) target = $region65
    $region64: #{tpu_custom_call.1} parent=1 // pred_region
      %s423 = ssub.s32 128, 128
      %424 = vsyncadd [#allocation4], %s423
      %s426 = sshll.u32 [#allocation10], 4
      %s427 = int_to_ptr.vmem [resolvable:$true] %s426
      %429 = dma.vmem_to_hbm [thread:$0]  %s427, 128, %s11, [#allocation4]
    $region65: #{tpu_custom_call.1} parent=1 // pred_fallthru
      _
    // Predicated region
    $region66: #{tpu_custom_call.1} parent=1 // pred_check
      _
    $region67: #{tpu_custom_call.1} parent=1 // pred_check_branch
      %431 = sbr.rel (0) target = $region69
    $region68: #{tpu_custom_call.1} parent=1 // pred_region
      %432 = dma.done [#allocation4], 128
    $region69: #{tpu_custom_call.1} parent=1 // pred_fallthru
      _
    %433 = vsyncpa [#allocation3], 1
    %434 = vsyncpa [#allocation6], 1
    %435 = vsyncpa [#allocation9], 1
    %436 = vsyncpa [#allocation4], 1

</llo_original>
